<compile_context>
chip_gen: v7x
topology: tpu7x:2x2x1
jax: 0.10.0
libtpu: 0.0.40
codegen_flags: <defaults>
</compile_context>

<pallas_src>
import functools

import jax
import jax.numpy as jnp
from jax.experimental import pallas as pl
from jax.experimental.pallas import tpu as pltpu


def _round_up(v, m):
    return ((v + m - 1) // m) * m


def dec_kernel(x_ref, w_ref, b_ref, ct_ref, cn_ref, out_ref, *,
               num_clusters, num_clusters_padded, alpha, inv_alpha):
    """Fused encoder + Student's-t soft-assignment for one batch tile.

    x_ref  : [TB, D_in]      input batch tile (bf16)
    w_ref  : [D_in, H_pad]   encoder weight, bf16          (resident)
    b_ref  : [1, H_pad]      encoder bias, f32             (resident)
    ct_ref : [H_pad, K_pad]  centers^T * (-2/alpha), bf16  (resident)
    cn_ref : [1, K_pad]      ||c_k||^2 / alpha, f32        (resident)
    out_ref: [TB, K_pad]     soft assignments (padded lanes are 0)
    """
    # ---- encoder: single Linear layer on the MXU (bf16 in, f32 accumulate) ----
    z = jnp.dot(x_ref[...], w_ref[...], preferred_element_type=jnp.float32)
    z = z + b_ref[...]                                             # [TB, H_pad] f32

    # ---- squared distances / alpha via the matmul identity ----
    # ||z-c||^2/alpha = ||z||^2/alpha + ||c||^2/alpha + z @ (-2/alpha * c^T)
    # (all alpha / 2.0 constants folded into the resident operands)
    z_norm = jnp.sum(z * z, axis=1, keepdims=True)                 # [TB, 1] f32
    if inv_alpha != 1.0:
        z_norm = z_norm * inv_alpha
    cross = jnp.dot(z.astype(ct_ref.dtype), ct_ref[...],
                    preferred_element_type=jnp.float32)            # [TB, K_pad]
    t = z_norm + cn_ref[...] + cross
    # Guard against tiny negative values from cancellation.
    t = jnp.maximum(t, 0.0)

    # ---- Student's-t numerator ----
    numerator = pl.reciprocal(1.0 + t, approx=True)                # EUP slot
    power = float(alpha + 1.0) / 2.0
    if power != 1.0:   # alpha == 1.0 -> pow is a no-op, skip it at trace time
        numerator = numerator ** power

    # Zero the padded cluster lanes so they don't pollute the normalization.
    if num_clusters != num_clusters_padded:
        lane = jax.lax.broadcasted_iota(jnp.int32, numerator.shape, 1)
        numerator = jnp.where(lane < num_clusters, numerator, 0.0)

    denom = jnp.sum(numerator, axis=1, keepdims=True)              # [TB, 1]
    # Exact normalization (rows must sum to 1 for the downstream KL target).
    out_ref[...] = numerator / denom


def _vmem_limit_bytes():
    """Generation-aware VMEM cap: ~48 MiB on v7x, ~96 MiB on v5e/v6e."""
    cap = 64 * 1024 * 1024
    try:
        info = pltpu.get_tpu_info()
        cap = int(getattr(info, "vmem_capacity_bytes", cap))
    except Exception:
        pass
    return min((cap * 3) // 4, 100 * 1024 * 1024)


def dec_forward(x, w, b, centers, *, alpha=1.0, tile_b=512):
    """DEC forward: soft assignments [B, K] for inputs x [B, D_in]."""
    B, D_in = x.shape
    K, H = centers.shape
    assert w.shape == (D_in, H)

    f32, bf16 = jnp.float32, jnp.bfloat16
    inv_alpha = 1.0 / float(alpha)

    # ---- lane-dense padding of the hidden and cluster dims ----
    H_pad = _round_up(H, 128)
    K_pad = _round_up(K, 128)

    # Batch-invariant precompute (hoisted out of the per-tile kernel body).
    w_p = jnp.pad(w.astype(f32), ((0, 0), (0, H_pad - H))).astype(bf16)
    b_p = jnp.pad(jnp.reshape(b, (1, H)).astype(f32), ((0, 0), (0, H_pad - H)))
    c_p = jnp.pad(centers.astype(f32), ((0, K_pad - K), (0, H_pad - H)))
    c_t = (c_p.T * (-2.0 * inv_alpha)).astype(bf16)                # [H_pad, K_pad]
    c_n = jnp.sum(c_p * c_p, axis=1, keepdims=True).T * inv_alpha  # [1, K_pad] f32

    # x read is the dominant HBM traffic -> keep its HBM copy in bf16.
    x_bf = x.astype(bf16)

    # ---- batch tiling ----
    # 16-row granularity (bf16 sublane packing); big tiles amortize the
    # ~0.35 us/step overhead, but cap so the grid has >= 2 steps when B allows
    # it (v7x megacore shards the "parallel" axis across its 2 TensorCores).
    SUB = 16
    half_b = _round_up(pl.cdiv(B, 2), SUB)
    tb = max(SUB, min(int(tile_b), half_b))
    grid_b = pl.cdiv(B, tb)
    B_pad = grid_b * tb
    if B_pad != B:
        x_bf = jnp.pad(x_bf, ((0, B_pad - B), (0, 0)))

    kernel = functools.partial(
        dec_kernel,
        num_clusters=K,
        num_clusters_padded=K_pad,
        alpha=float(alpha),
        inv_alpha=inv_alpha,
    )

    def run(single_buffer_resident):
        def resident(shape):
            if single_buffer_resident:
                # Constant index_map -> fetched once; 1 buffer saves VMEM.
                return pl.BlockSpec(shape, lambda i: (0, 0),
                                    pipeline_mode=pl.Buffered(1))
            return pl.BlockSpec(shape, lambda i: (0, 0))

        return pl.pallas_call(
            kernel,
            out_shape=jax.ShapeDtypeStruct((B_pad, K_pad), jnp.float32),
            grid=(grid_b,),
            in_specs=[
                pl.BlockSpec((tb, D_in), lambda i: (i, 0)),  # x: tiled over batch
                resident((D_in, H_pad)),                     # W
                resident((1, H_pad)),                        # bias
                resident((H_pad, K_pad)),                    # centers^T * (-2/alpha)
                resident((1, K_pad)),                        # ||c||^2 / alpha
            ],
            out_specs=pl.BlockSpec((tb, K_pad), lambda i: (i, 0)),
            compiler_params=pltpu.CompilerParams(
                # Batch tiles are independent -> megacore-shardable.
                dimension_semantics=("parallel",),
                vmem_limit_bytes=_vmem_limit_bytes(),
            ),
        )(x_bf, w_p, b_p, c_t, c_n)

    try:
        out = run(single_buffer_resident=True)
    except Exception:
        # Fallback if this JAX/Mosaic build rejects single-buffered BlockSpecs.
        out = run(single_buffer_resident=False)

    if B_pad != B or K_pad != K:
        out = out[:B, :K]
    return out


def reference_forward(x, w, b, centers, *, alpha=1.0):
    """Pure-JAX f32 reference mirroring the PyTorch forward."""
    z = x @ w + jnp.reshape(b, (1, -1))                            # encoder
    norm_squared = jnp.sum((z[:, None, :] - centers[None, :, :]) ** 2, axis=2)
    numerator = 1.0 / (1.0 + norm_squared / alpha)
    power = float(alpha + 1.0) / 2.0
    numerator = numerator ** power
    return numerator / jnp.sum(numerator, axis=1, keepdims=True)


if __name__ == "__main__":
    # Small shapes consistent with the module:
    #   batch=8, input dim=32, hidden (encoder output) dim=32, clusters=4
    B, D_IN, H, K = 8, 32, 32, 4
    ALPHA = 1.0

    key = jax.random.PRNGKey(0)
    kx, kw, kb, kc = jax.random.split(key, 4)

    x = jax.random.normal(kx, (B, D_IN), dtype=jnp.float32)

    # Linear(D_IN -> H) params, uniform init like PyTorch.
    bound_w = 1.0 / jnp.sqrt(D_IN)
    w = jax.random.uniform(kw, (D_IN, H), minval=-bound_w, maxval=bound_w,
                           dtype=jnp.float32)
    b = jax.random.uniform(kb, (1, H), minval=-bound_w, maxval=bound_w,
                           dtype=jnp.float32)

    # Cluster centers: Xavier-uniform, as in ClusterAssignment.__init__.
    bound_c = jnp.sqrt(6.0 / (K + H))
    centers = jax.random.uniform(kc, (K, H), minval=-bound_c, maxval=bound_c,
                                 dtype=jnp.float32)

    out = dec_forward(x, w, b, centers, alpha=ALPHA)
    jax.block_until_ready(out)

    ref = reference_forward(x, w, b, centers, alpha=ALPHA)
    assert out.shape == (B, K)
    # Tolerance accounts for bf16 matmul operands + the approximate EUP
    # reciprocal in the numerator (f32 accumulation / tail everywhere else).
    assert jnp.allclose(out, ref, atol=2e-2, rtol=2e-2), "mismatch vs reference"
    # Exact final normalization: rows sum to 1 at f32 precision.
    assert jnp.allclose(jnp.sum(out, axis=1), 1.0, atol=1e-5)

    print("KERNEL_OK")
</pallas_src>

<mosaic_0001>
module attributes {stable_mosaic.version = 11 : i64} {
  func.func @dec_kernel(%arg0: i32, %arg1: memref<16x32xbf16, #tpu.memory_space<vmem>>, %arg2: memref<32x128xbf16, #tpu.memory_space<vmem>>, %arg3: memref<1x128xf32, #tpu.memory_space<vmem>>, %arg4: memref<128x128xbf16, #tpu.memory_space<vmem>>, %arg5: memref<1x128xf32, #tpu.memory_space<vmem>>, %arg6: memref<16x128xf32, #tpu.memory_space<vmem>>) attributes {dimension_semantics = [#tpu.dimension_semantics<parallel>], iteration_bounds = array<i64: 1>, scalar_prefetch = 0 : i64, scratch_operands = 0 : i64, tpu.core_type = #tpu.core_type<tc>, window_params = [{transform_indices = @transform_0, window_bounds = array<i64: 16, 32>}, {pipeline_mode = #tpu.pipeline_mode<synchronous>, transform_indices = @transform_1, window_bounds = array<i64: 32, 128>}, {pipeline_mode = #tpu.pipeline_mode<synchronous>, transform_indices = @transform_2, window_bounds = array<i64: 1, 128>}, {pipeline_mode = #tpu.pipeline_mode<synchronous>, transform_indices = @transform_3, window_bounds = array<i64: 128, 128>}, {pipeline_mode = #tpu.pipeline_mode<synchronous>, transform_indices = @transform_4, window_bounds = array<i64: 1, 128>}, {transform_indices = @transform_5, window_bounds = array<i64: 16, 128>}]} {
    %c0 = arith.constant 0 : index
    %c0_0 = arith.constant 0 : index
    %0 = vector.load %arg1[%c0, %c0_0] : memref<16x32xbf16, #tpu.memory_space<vmem>>, vector<16x32xbf16>
    %c0_1 = arith.constant 0 : index
    %c0_2 = arith.constant 0 : index
    %1 = vector.load %arg2[%c0_1, %c0_2] : memref<32x128xbf16, #tpu.memory_space<vmem>>, vector<32x128xbf16>
    %cst = arith.constant dense<0.000000e+00> : vector<16x128xf32>
    %2 = tpu.matmul %0, %1, %cst {dimension_numbers = #tpu.dot_dimension_numbers<[1], [0], [0], [1], [0, 0, 1, 1], [], []>} : vector<16x32xbf16>, vector<32x128xbf16>, vector<16x128xf32> -> vector<16x128xf32>
    %c0_3 = arith.constant 0 : index
    %c0_4 = arith.constant 0 : index
    %3 = vector.load %arg3[%c0_3, %c0_4] : memref<1x128xf32, #tpu.memory_space<vmem>>, vector<1x128xf32>
    %4 = vector.broadcast %3 : vector<1x128xf32> to vector<16x128xf32>
    %5 = arith.addf %2, %4 : vector<16x128xf32>
    %6 = arith.mulf %5, %5 : vector<16x128xf32>
    %cst_5 = arith.constant dense<0.000000e+00> : vector<16xf32>
    %7 = vector.multi_reduction <add>, %6, %cst_5 [1] : vector<16x128xf32> to vector<16xf32>
    %8 = vector.shape_cast %7 : vector<16xf32> to vector<16x1xf32>
    %9 = arith.truncf %5 : vector<16x128xf32> to vector<16x128xbf16>
    %c0_6 = arith.constant 0 : index
    %c0_7 = arith.constant 0 : index
    %10 = vector.load %arg4[%c0_6, %c0_7] : memref<128x128xbf16, #tpu.memory_space<vmem>>, vector<128x128xbf16>
    %cst_8 = arith.constant dense<0.000000e+00> : vector<16x128xf32>
    %11 = tpu.matmul %9, %10, %cst_8 {dimension_numbers = #tpu.dot_dimension_numbers<[1], [0], [0], [1], [0, 0, 1, 1], [], []>} : vector<16x128xbf16>, vector<128x128xbf16>, vector<16x128xf32> -> vector<16x128xf32>
    %c0_9 = arith.constant 0 : index
    %c0_10 = arith.constant 0 : index
    %12 = vector.load %arg5[%c0_9, %c0_10] : memref<1x128xf32, #tpu.memory_space<vmem>>, vector<1x128xf32>
    %13 = vector.broadcast %8 : vector<16x1xf32> to vector<16x128xf32>
    %14 = vector.broadcast %12 : vector<1x128xf32> to vector<16x128xf32>
    %15 = arith.addf %13, %14 : vector<16x128xf32>
    %16 = arith.addf %15, %11 : vector<16x128xf32>
    %cst_11 = arith.constant 0.000000e+00 : f32
    %17 = vector.broadcast %cst_11 : f32 to vector<16x128xf32>
    %18 = arith.maximumf %16, %17 : vector<16x128xf32>
    %cst_12 = arith.constant 1.000000e+00 : f32
    %19 = vector.broadcast %cst_12 : f32 to vector<16x128xf32>
    %20 = arith.addf %19, %18 : vector<16x128xf32>
    %21 = tpu.reciprocal %20 {approx = true} : vector<16x128xf32> -> vector<16x128xf32>
    %22 = tpu.iota {dimensions = array<i32: 1>} : vector<16x128xi32>
    %c4_i32 = arith.constant 4 : i32
    %23 = vector.broadcast %c4_i32 : i32 to vector<16x128xi32>
    %24 = arith.cmpi slt, %22, %23 : vector<16x128xi32>
    %cst_13 = arith.constant 0.000000e+00 : f32
    %25 = vector.broadcast %cst_13 : f32 to vector<16x128xf32>
    %26 = arith.select %24, %21, %25 : vector<16x128xi1>, vector<16x128xf32>
    %cst_14 = arith.constant dense<0.000000e+00> : vector<16xf32>
    %27 = vector.multi_reduction <add>, %26, %cst_14 [1] : vector<16x128xf32> to vector<16xf32>
    %28 = vector.shape_cast %27 : vector<16xf32> to vector<16x1xf32>
    %29 = vector.broadcast %28 : vector<16x1xf32> to vector<16x128xf32>
    %30 = arith.divf %26, %29 : vector<16x128xf32>
    %c0_15 = arith.constant 0 : index
    %c0_16 = arith.constant 0 : index
    %31 = vector.load %arg6[%c0_15, %c0_16] : memref<16x128xf32, #tpu.memory_space<vmem>>, vector<16x128xf32>
    tpu.vector_store %arg6[%c0_15, %c0_16], %30 {strides = array<i32>} : memref<16x128xf32, #tpu.memory_space<vmem>>, vector<16x128xf32>,
    return
  }
  func.func @transform_0(%arg0: i32) -> (i32, i32) {
    %c0_i32 = arith.constant 0 : i32
    %c0_i32_0 = arith.constant 0 : i32
    return %arg0, %c0_i32 : i32, i32
  }
  func.func @transform_1(%arg0: i32) -> (i32, i32) {
    %c0_i32 = arith.constant 0 : i32
    %c0_i32_0 = arith.constant 0 : i32
    %c0_i32_1 = arith.constant 0 : i32
    return %c0_i32, %c0_i32_0 : i32, i32
  }
  func.func @transform_2(%arg0: i32) -> (i32, i32) {
    %c0_i32 = arith.constant 0 : i32
    %c0_i32_0 = arith.constant 0 : i32
    %c0_i32_1 = arith.constant 0 : i32
    return %c0_i32, %c0_i32_0 : i32, i32
  }
  func.func @transform_3(%arg0: i32) -> (i32, i32) {
    %c0_i32 = arith.constant 0 : i32
    %c0_i32_0 = arith.constant 0 : i32
    %c0_i32_1 = arith.constant 0 : i32
    return %c0_i32, %c0_i32_0 : i32, i32
  }
  func.func @transform_4(%arg0: i32) -> (i32, i32) {
    %c0_i32 = arith.constant 0 : i32
    %c0_i32_0 = arith.constant 0 : i32
    %c0_i32_1 = arith.constant 0 : i32
    return %c0_i32, %c0_i32_0 : i32, i32
  }
  func.func @transform_5(%arg0: i32) -> (i32, i32) {
    %c0_i32 = arith.constant 0 : i32
    %c0_i32_0 = arith.constant 0 : i32
    return %arg0, %c0_i32 : i32, i32
  }
}

module attributes {stable_mosaic.version = 11 : i64} {
  func.func @dec_kernel(%arg0: i32, %arg1: memref<16x32xbf16, #tpu.memory_space<vmem>>, %arg2: memref<32x128xbf16, #tpu.memory_space<vmem>>, %arg3: memref<1x128xf32, #tpu.memory_space<vmem>>, %arg4: memref<128x128xbf16, #tpu.memory_space<vmem>>, %arg5: memref<1x128xf32, #tpu.memory_space<vmem>>, %arg6: memref<16x128xf32, #tpu.memory_space<vmem>>) attributes {dimension_semantics = [#tpu.dimension_semantics<parallel>], iteration_bounds = array<i64: 1>, scalar_prefetch = 0 : i64, scratch_operands = 0 : i64, tpu.core_type = #tpu.core_type<tc>, window_params = [{transform_indices = @transform_0, window_bounds = array<i64: 16, 32>}, {pipeline_mode = #tpu.pipeline_mode<synchronous>, transform_indices = @transform_1, window_bounds = array<i64: 32, 128>}, {pipeline_mode = #tpu.pipeline_mode<synchronous>, transform_indices = @transform_2, window_bounds = array<i64: 1, 128>}, {pipeline_mode = #tpu.pipeline_mode<synchronous>, transform_indices = @transform_3, window_bounds = array<i64: 128, 128>}, {pipeline_mode = #tpu.pipeline_mode<synchronous>, transform_indices = @transform_4, window_bounds = array<i64: 1, 128>}, {transform_indices = @transform_5, window_bounds = array<i64: 16, 128>}]} {
    %c0 = arith.constant 0 : index
    %c0_0 = arith.constant 0 : index
    %0 = vector.load %arg1[%c0, %c0_0] : memref<16x32xbf16, #tpu.memory_space<vmem>>, vector<16x32xbf16>
    %c0_1 = arith.constant 0 : index
    %c0_2 = arith.constant 0 : index
    %1 = vector.load %arg2[%c0_1, %c0_2] : memref<32x128xbf16, #tpu.memory_space<vmem>>, vector<32x128xbf16>
    %cst = arith.constant dense<0.000000e+00> : vector<16x128xf32>
    %2 = tpu.matmul %0, %1, %cst {dimension_numbers = #tpu.dot_dimension_numbers<[1], [0], [0], [1], [0, 0, 1, 1], [], []>} : vector<16x32xbf16>, vector<32x128xbf16>, vector<16x128xf32> -> vector<16x128xf32>
    %c0_3 = arith.constant 0 : index
    %c0_4 = arith.constant 0 : index
    %3 = vector.load %arg3[%c0_3, %c0_4] : memref<1x128xf32, #tpu.memory_space<vmem>>, vector<1x128xf32>
    %4 = vector.broadcast %3 : vector<1x128xf32> to vector<16x128xf32>
    %5 = arith.addf %2, %4 : vector<16x128xf32>
    %6 = arith.mulf %5, %5 : vector<16x128xf32>
    %cst_5 = arith.constant dense<0.000000e+00> : vector<16xf32>
    %7 = vector.multi_reduction <add>, %6, %cst_5 [1] : vector<16x128xf32> to vector<16xf32>
    %8 = vector.shape_cast %7 : vector<16xf32> to vector<16x1xf32>
    %9 = arith.truncf %5 : vector<16x128xf32> to vector<16x128xbf16>
    %c0_6 = arith.constant 0 : index
    %c0_7 = arith.constant 0 : index
    %10 = vector.load %arg4[%c0_6, %c0_7] : memref<128x128xbf16, #tpu.memory_space<vmem>>, vector<128x128xbf16>
    %cst_8 = arith.constant dense<0.000000e+00> : vector<16x128xf32>
    %11 = tpu.matmul %9, %10, %cst_8 {dimension_numbers = #tpu.dot_dimension_numbers<[1], [0], [0], [1], [0, 0, 1, 1], [], []>} : vector<16x128xbf16>, vector<128x128xbf16>, vector<16x128xf32> -> vector<16x128xf32>
    %c0_9 = arith.constant 0 : index
    %c0_10 = arith.constant 0 : index
    %12 = vector.load %arg5[%c0_9, %c0_10] : memref<1x128xf32, #tpu.memory_space<vmem>>, vector<1x128xf32>
    %13 = vector.broadcast %8 : vector<16x1xf32> to vector<16x128xf32>
    %14 = vector.broadcast %12 : vector<1x128xf32> to vector<16x128xf32>
    %15 = arith.addf %13, %14 : vector<16x128xf32>
    %16 = arith.addf %15, %11 : vector<16x128xf32>
    %cst_11 = arith.constant 0.000000e+00 : f32
    %17 = vector.broadcast %cst_11 : f32 to vector<16x128xf32>
    %18 = arith.maximumf %16, %17 : vector<16x128xf32>
    %cst_12 = arith.constant 1.000000e+00 : f32
    %19 = vector.broadcast %cst_12 : f32 to vector<16x128xf32>
    %20 = arith.addf %19, %18 : vector<16x128xf32>
    %21 = tpu.reciprocal %20 {approx = true} : vector<16x128xf32> -> vector<16x128xf32>
    %22 = tpu.iota {dimensions = array<i32: 1>} : vector<16x128xi32>
    %c4_i32 = arith.constant 4 : i32
    %23 = vector.broadcast %c4_i32 : i32 to vector<16x128xi32>
    %24 = arith.cmpi slt, %22, %23 : vector<16x128xi32>
    %cst_13 = arith.constant 0.000000e+00 : f32
    %25 = vector.broadcast %cst_13 : f32 to vector<16x128xf32>
    %26 = arith.select %24, %21, %25 : vector<16x128xi1>, vector<16x128xf32>
    %cst_14 = arith.constant dense<0.000000e+00> : vector<16xf32>
    %27 = vector.multi_reduction <add>, %26, %cst_14 [1] : vector<16x128xf32> to vector<16xf32>
    %28 = vector.shape_cast %27 : vector<16xf32> to vector<16x1xf32>
    %29 = vector.broadcast %28 : vector<16x1xf32> to vector<16x128xf32>
    %30 = arith.divf %26, %29 : vector<16x128xf32>
    %c0_15 = arith.constant 0 : index
    %c0_16 = arith.constant 0 : index
    %31 = vector.load %arg6[%c0_15, %c0_16] : memref<16x128xf32, #tpu.memory_space<vmem>>, vector<16x128xf32>
    tpu.vector_store %arg6[%c0_15, %c0_16], %30 {strides = array<i32>} : memref<16x128xf32, #tpu.memory_space<vmem>>, vector<16x128xf32>,
    return
  }
  func.func @transform_0(%arg0: i32) -> (i32, i32) {
    %c0_i32 = arith.constant 0 : i32
    %c0_i32_0 = arith.constant 0 : i32
    return %arg0, %c0_i32 : i32, i32
  }
  func.func @transform_1(%arg0: i32) -> (i32, i32) {
    %c0_i32 = arith.constant 0 : i32
    %c0_i32_0 = arith.constant 0 : i32
    %c0_i32_1 = arith.constant 0 : i32
    return %c0_i32, %c0_i32_0 : i32, i32
  }
  func.func @transform_2(%arg0: i32) -> (i32, i32) {
    %c0_i32 = arith.constant 0 : i32
    %c0_i32_0 = arith.constant 0 : i32
    %c0_i32_1 = arith.constant 0 : i32
    return %c0_i32, %c0_i32_0 : i32, i32
  }
  func.func @transform_3(%arg0: i32) -> (i32, i32) {
    %c0_i32 = arith.constant 0 : i32
    %c0_i32_0 = arith.constant 0 : i32
    %c0_i32_1 = arith.constant 0 : i32
    return %c0_i32, %c0_i32_0 : i32, i32
  }
  func.func @transform_4(%arg0: i32) -> (i32, i32) {
    %c0_i32 = arith.constant 0 : i32
    %c0_i32_0 = arith.constant 0 : i32
    %c0_i32_1 = arith.constant 0 : i32
    return %c0_i32, %c0_i32_0 : i32, i32
  }
  func.func @transform_5(%arg0: i32) -> (i32, i32) {
    %c0_i32 = arith.constant 0 : i32
    %c0_i32_0 = arith.constant 0 : i32
    return %arg0, %c0_i32 : i32, i32
  }
}

</mosaic_0001>

<llo_original>
// kernel: tpu_custom_call.1
$region0: #{tpu_custom_call.1}
  #allocation0 [shape = 'u32[]', space=smem, size = 0x4, offset = 0x4, fixed_abs, tag = 'smem constant byte address 0x4 - core index']
  #allocation1 [shape = 'u32[144,128]{1,0:T(1,128)}', space=vmem, size = 0x12000, scoped, tag = 'internal scratch']
  %s0 = inlined_call_operand.hbm [shape: bf16[16,32], index: 0, kind: input, shape index: {}]
  %s1 = inlined_call_operand.hbm [shape: bf16[32,128], index: 1, kind: input, shape index: {}]
  %s2 = inlined_call_operand.vmem [shape: f32[1,128], index: 2, kind: input, shape index: {}]
  %s3 = inlined_call_operand.hbm [shape: bf16[128,128], index: 3, kind: input, shape index: {}]
  %s4 = inlined_call_operand.vmem [shape: f32[1,128], index: 4, kind: input, shape index: {}]
  %s5 = inlined_call_operand.hbm [shape: f32[16,128], index: 5, kind: output, shape index: {}]
  %s6 = sld [smem:[#allocation0]]
  $region42: #{tpu_custom_call.1} parent=0
    _
  %s8 = ssub.s32 1, %s6
  %s9 = scalar_select 0, %s8, %s6
  $region1: #{tpu_custom_call.1} parent=0
    #allocation2 [shape = 'u8[4096]{0}', space=vmem, size = 0x1000, scoped, tag = 'input window, operand 0, single buffered']
    #allocation3 [shape = 's32[1]{0}', space=sflag, size = 0x4, scoped, tag = 'scoped memory for tpu_custom_call.1']
    #allocation4 [shape = 's32[1]{0}', space=sflag, size = 0x4, scoped, tag = 'scoped memory for tpu_custom_call.1']
    #allocation5 [shape = 'u8[8192]{0}', space=vmem, size = 0x2000, scoped, tag = 'input window, operand 1, single buffered']
    #allocation6 [shape = 's32[1]{0}', space=sflag, size = 0x4, scoped, tag = 'scoped memory for tpu_custom_call.1']
    #allocation7 [shape = 'u8[32768]{0}', space=vmem, size = 0x8000, scoped, tag = 'input window, operand 3, single buffered']
    #allocation8 [shape = 'u8[8192]{0}', space=vmem, size = 0x2000, scoped, tag = 'output window, operand 0, single buffered']
    %10 = vsyncpa [#allocation3], 0
    %11 = vsyncpa [#allocation6], 0
    %12 = vsyncpa [#allocation4], 0
    // Predicated region
    $region2: #{tpu_custom_call.1} parent=1 // pred_check
      _
    $region3: #{tpu_custom_call.1} parent=1 // pred_check_branch
      %14 = sbr.rel (0) target = $region5
    $region4: #{tpu_custom_call.1} parent=1 // pred_region
      %s16 = ssub.s32 128, 128
      %17 = vsyncadd [#allocation3], %s16
      %s18 = sshll.u32 [#allocation2], 4
      %s19 = int_to_ptr.vmem [resolvable:$true] %s18
      %24 = dma.hbm_to_vmem [thread:$0]  %s0, 128, %s19, [#allocation3], 64, 64, 4
    $region5: #{tpu_custom_call.1} parent=1 // pred_fallthru
      _
    // Predicated region
    $region6: #{tpu_custom_call.1} parent=1 // pred_check
      _
    $region7: #{tpu_custom_call.1} parent=1 // pred_check_branch
      %26 = sbr.rel (0) target = $region9
    $region8: #{tpu_custom_call.1} parent=1 // pred_region
      %s28 = ssub.s32 256, 256
      %29 = vsyncadd [#allocation6], %s28
      %s30 = sshll.u32 [#allocation5], 4
      %s31 = int_to_ptr.vmem [resolvable:$true] %s30
      %36 = dma.hbm_to_vmem [thread:$0]  %s1, 256, %s31, [#allocation6], 64, 64, 4
    $region9: #{tpu_custom_call.1} parent=1 // pred_fallthru
      _
    // Predicated region
    $region10: #{tpu_custom_call.1} parent=1 // pred_check
      _
    $region11: #{tpu_custom_call.1} parent=1 // pred_check_branch
      %38 = sbr.rel (0) target = $region13
    $region12: #{tpu_custom_call.1} parent=1 // pred_region
      _
    $region13: #{tpu_custom_call.1} parent=1 // pred_fallthru
      _
    // Predicated region
    $region14: #{tpu_custom_call.1} parent=1 // pred_check
      _
    $region15: #{tpu_custom_call.1} parent=1 // pred_check_branch
      %40 = sbr.rel (0) target = $region17
    $region16: #{tpu_custom_call.1} parent=1 // pred_region
      %s42 = ssub.s32 1024, 1024
      %43 = vsyncadd [#allocation6], %s42
      %s44 = sshll.u32 [#allocation7], 4
      %s45 = int_to_ptr.vmem [resolvable:$true] %s44
      %50 = dma.hbm_to_vmem [thread:$0]  %s3, 1024, %s45, [#allocation6], 64, 64, 4
    $region17: #{tpu_custom_call.1} parent=1 // pred_fallthru
      _
    // Predicated region
    $region18: #{tpu_custom_call.1} parent=1 // pred_check
      _
    $region19: #{tpu_custom_call.1} parent=1 // pred_check_branch
      %52 = sbr.rel (0) target = $region21
    $region20: #{tpu_custom_call.1} parent=1 // pred_region
      _
    $region21: #{tpu_custom_call.1} parent=1 // pred_fallthru
      _
    // Predicated region
    $region22: #{tpu_custom_call.1} parent=1 // pred_check
      _
    $region23: #{tpu_custom_call.1} parent=1 // pred_check_branch
      %54 = sbr.rel (0) target = $region25
    $region24: #{tpu_custom_call.1} parent=1 // pred_region
      %55 = dma.done [#allocation3], 128
    $region25: #{tpu_custom_call.1} parent=1 // pred_fallthru
      _
    // Predicated region
    $region26: #{tpu_custom_call.1} parent=1 // pred_check
      _
    $region27: #{tpu_custom_call.1} parent=1 // pred_check_branch
      %57 = sbr.rel (0) target = $region29
    $region28: #{tpu_custom_call.1} parent=1 // pred_region
      %58 = dma.done [#allocation6], 256
    $region29: #{tpu_custom_call.1} parent=1 // pred_fallthru
      _
    // Predicated region
    $region30: #{tpu_custom_call.1} parent=1 // pred_check
      _
    $region31: #{tpu_custom_call.1} parent=1 // pred_check_branch
      %60 = sbr.rel (0) target = $region33
    $region32: #{tpu_custom_call.1} parent=1 // pred_region
      %61 = dma.done [#allocation6], 1024
    $region33: #{tpu_custom_call.1} parent=1 // pred_fallthru
      _
    %v63 = vld [vmem:[#allocation2] sm:$0xf]
    %v64 = vld [vmem:[#allocation2 + $0x4] sm:$0xf]
    %v65 = vld [vmem:[#allocation5] sm:$0xf]
    %v66 = vld [vmem:[#allocation5 + $0x4] sm:$0xf]
    %v67 = vld [vmem:[#allocation5 + $0x8] sm:$0xf]
    %v68 = vld [vmem:[#allocation5 + $0xc] sm:$0xf]
    %v69 = vld [vmem:[%s2] sm:$0x1]
    %v71 = vlaneseq
    %v72 = vshrl.u32 %v71, 7
    %v73 = vsub.s32 0, %v72
    %v74 = vrot.slane %v69, %v73
    %v78 = vunpack.c.l.b16 %v63
    %v79 = vunpack.c.l.b16 %v64
    %v80 = vpack.c.b16 %v79, %v78
    %v85 = vunpack.c.l.b16 %v65
    %v86 = vunpack.c.l.b16 %v66
    %v87 = vunpack.c.l.b16 %v67
    %v88 = vunpack.c.l.b16 %v68
    %v89 = vpack.c.b16 %v86, %v85
    %v90 = vpack.c.b16 %v88, %v87
    %vm93 = vcmask 261120
    %v95 = vsel %vm93, %v80, 0
    %97 = vmatprep.subr.bf16.mxu0 0
    %98 = vmatpush1.bf16.msra.mxu0 %v89
    %99 = vmatprep.subr.bf16.mxu0 0
    %100 = vmatpush1.bf16.msra.mxu0 %v90
    %101 = vmatprep.subr.bf16.mxu0 0
    %102 = vmatpush1.bf16.msra.mxu0 0
    %103 = vmatprep.subr.bf16.mxu0 0
    %104 = vmatpush1.bf16.msra.mxu0 0
    %105 = vmatprep.subr.bf16.mxu0 0
    %106 = vmatpush1.bf16.msra.mxu0 0
    %107 = vmatprep.subr.bf16.mxu0 0
    %108 = vmatpush1.bf16.msra.mxu0 0
    %109 = vmatprep.subr.bf16.mxu0 0
    %110 = vmatpush1.bf16.msra.mxu0 0
    %111 = vmatprep.subr.bf16.mxu0 0
    %112 = vmatpush1.bf16.msra.mxu0 0
    %113 = vmatprep.subr.bf16.mxu0 0
    %114 = vmatpush1.bf16.msra.mxu0 0
    %115 = vmatprep.subr.bf16.mxu0 0
    %116 = vmatpush1.bf16.msra.mxu0 0
    %117 = vmatprep.subr.bf16.mxu0 0
    %118 = vmatpush1.bf16.msra.mxu0 0
    %119 = vmatprep.subr.bf16.mxu0 0
    %120 = vmatpush1.bf16.msra.mxu0 0
    %121 = vmatprep.subr.bf16.mxu0 0
    %122 = vmatpush1.bf16.msra.mxu0 0
    %123 = vmatprep.subr.bf16.mxu0 0
    %124 = vmatpush1.bf16.msra.mxu0 0
    %125 = vmatprep.subr.bf16.mxu0 0
    %126 = vmatpush1.bf16.msra.mxu0 0
    %127 = vmatprep.subr.bf16.mxu0 0
    %128 = vmatpush1.bf16.msra.mxu0 0
    %129 = vmatprep.mubr.bf16.mxu0 0
    %130 = vmatmul.mubr.bf16.gmra.mrb[0].mxu0 %v95
    %v131 = vpop.f32.mrb[0].mxu0
    %v132 = vadd.f32 %v74, %v131
    %v133 = vpop.f32.mrb[0].mxu0
    %v134 = vpop.f32.mrb[0].mxu0
    %v135 = vadd.f32 %v74, %v134
    %v136 = vpop.f32.mrb[0].mxu0
    %137 = vdwg.mxu0
    %v138 = vmul.f32 %v132, %v132
    %v139 = vmul.f32 %v135, %v135
    %140 = vadd.xlane.f32.xlu0 %v138
    %v141 = vpop.xlane.xlu0 %140
    %142 = vadd.xlane.f32.xlu0 %v139
    %v143 = vpop.xlane.xlu0 %142
    %v144 = vpack.c.bf16 %v135, %v132
    %v145 = vld [vmem:[#allocation7] sm:$0xf]
    %v146 = vld [vmem:[#allocation7 + $0x4] sm:$0xf]
    %v147 = vld [vmem:[#allocation7 + $0x8] sm:$0xf]
    %v148 = vld [vmem:[#allocation7 + $0xc] sm:$0xf]
    %v149 = vld [vmem:[#allocation7 + $0x10] sm:$0xf]
    %v150 = vld [vmem:[#allocation7 + $0x14] sm:$0xf]
    %v151 = vld [vmem:[#allocation7 + $0x18] sm:$0xf]
    %v152 = vld [vmem:[#allocation7 + $0x1c] sm:$0xf]
    %v153 = vld [vmem:[#allocation7 + $0x20] sm:$0xf]
    %v154 = vld [vmem:[#allocation7 + $0x24] sm:$0xf]
    %v155 = vld [vmem:[#allocation7 + $0x28] sm:$0xf]
    %v156 = vld [vmem:[#allocation7 + $0x2c] sm:$0xf]
    %v157 = vld [vmem:[#allocation7 + $0x30] sm:$0xf]
    %v158 = vld [vmem:[#allocation7 + $0x34] sm:$0xf]
    %v159 = vld [vmem:[#allocation7 + $0x38] sm:$0xf]
    %v160 = vld [vmem:[#allocation7 + $0x3c] sm:$0xf]
    %v177 = vunpack.c.l.b16 %v145
    %v178 = vunpack.c.l.b16 %v146
    %v179 = vunpack.c.l.b16 %v147
    %v180 = vunpack.c.l.b16 %v148
    %v181 = vunpack.c.l.b16 %v149
    %v182 = vunpack.c.l.b16 %v150
    %v183 = vunpack.c.l.b16 %v151
    %v184 = vunpack.c.l.b16 %v152
    %v185 = vunpack.c.l.b16 %v153
    %v186 = vunpack.c.l.b16 %v154
    %v187 = vunpack.c.l.b16 %v155
    %v188 = vunpack.c.l.b16 %v156
    %v189 = vunpack.c.l.b16 %v157
    %v190 = vunpack.c.l.b16 %v158
    %v191 = vunpack.c.l.b16 %v159
    %v192 = vunpack.c.l.b16 %v160
    %v193 = vpack.c.b16 %v178, %v177
    %v194 = vpack.c.b16 %v180, %v179
    %v195 = vpack.c.b16 %v182, %v181
    %v196 = vpack.c.b16 %v184, %v183
    %v197 = vpack.c.b16 %v186, %v185
    %v198 = vpack.c.b16 %v188, %v187
    %v199 = vpack.c.b16 %v190, %v189
    %v200 = vpack.c.b16 %v192, %v191
    %209 = vmatprep.subr.bf16.mxu0 0
    %210 = vmatpush1.bf16.msra.mxu0 %v193
    %211 = vmatprep.subr.bf16.mxu0 0
    %212 = vmatpush1.bf16.msra.mxu0 %v194
    %213 = vmatprep.subr.bf16.mxu0 0
    %214 = vmatpush1.bf16.msra.mxu0 %v195
    %215 = vmatprep.subr.bf16.mxu0 0
    %216 = vmatpush1.bf16.msra.mxu0 %v196
    %217 = vmatprep.subr.bf16.mxu0 0
    %218 = vmatpush1.bf16.msra.mxu0 %v197
    %219 = vmatprep.subr.bf16.mxu0 0
    %220 = vmatpush1.bf16.msra.mxu0 %v198
    %221 = vmatprep.subr.bf16.mxu0 0
    %222 = vmatpush1.bf16.msra.mxu0 %v199
    %223 = vmatprep.subr.bf16.mxu0 0
    %224 = vmatpush1.bf16.msra.mxu0 %v200
    %225 = vmatprep.subr.bf16.mxu0 0
    %226 = vmatpush1.bf16.msra.mxu0 0
    %227 = vmatprep.subr.bf16.mxu0 0
    %228 = vmatpush1.bf16.msra.mxu0 0
    %229 = vmatprep.subr.bf16.mxu0 0
    %230 = vmatpush1.bf16.msra.mxu0 0
    %231 = vmatprep.subr.bf16.mxu0 0
    %232 = vmatpush1.bf16.msra.mxu0 0
    %233 = vmatprep.subr.bf16.mxu0 0
    %234 = vmatpush1.bf16.msra.mxu0 0
    %235 = vmatprep.subr.bf16.mxu0 0
    %236 = vmatpush1.bf16.msra.mxu0 0
    %237 = vmatprep.subr.bf16.mxu0 0
    %238 = vmatpush1.bf16.msra.mxu0 0
    %239 = vmatprep.subr.bf16.mxu0 0
    %240 = vmatpush1.bf16.msra.mxu0 0
    %241 = vmatprep.mubr.bf16.mxu0 0
    %242 = vmatmul.mubr.bf16.gmra.mrb[0].mxu0 %v144
    %v243 = vpop.f32.mrb[0].mxu0
    %v244 = vadd.f32 0.0, %v243
    %v245 = vpop.f32.mrb[0].mxu0
    %v246 = vpop.f32.mrb[0].mxu0
    %v247 = vadd.f32 0.0, %v246
    %v248 = vpop.f32.mrb[0].mxu0
    %249 = vdwg.mxu0
    %v250 = vld [vmem:[%s4] sm:$0x1]
    %v252 = vlaneseq
    %v253 = vshrl.u32 %v252, 7
    %v254 = vsub.s32 0, %v253
    %v255 = vrot.slane %v250, %v254
    %v257 = vadd.f32 %v141, %v255
    %v258 = vadd.f32 %v143, %v255
    %v259 = vadd.f32 %v257, %v244
    %v260 = vadd.f32 %v258, %v247
    %v261 = vmax.f32 %v259, 0.0
    %v262 = vmax.f32 %v260, 0.0
    %v263 = vadd.f32 %v261, 1.0
    %v264 = vadd.f32 %v262, 1.0
    %v265 = vrcp.pop %v263
    %v266 = vrcp.pop %v264
    %v267 = vlaneseq
    %v268 = vand.u32 %v267, 127
    %vm269 = vcmp.lt.s32.totalorder %v268, 4
    %v270 = vsel %vm269, %v265, 0.0
    %v271 = vsel %vm269, %v266, 0.0
    %272 = vadd.xlane.f32.xlu0 %v270
    %v273 = vpop.xlane.xlu0 %272
    %274 = vadd.xlane.f32.xlu0 %v271
    %v275 = vpop.xlane.xlu0 %274
    %v276 = vrcp.pop %v273
    %v277 = vmul.f32 %v270, %v276
    %v278 = vrcp.pop %v275
    %v279 = vmul.f32 %v271, %v278
    %280 = vst [vmem:[#allocation8] sm:$0xff] %v277
    %281 = vst [vmem:[#allocation8 + $0x8] sm:$0xff] %v279
    // Predicated region
    $region34: #{tpu_custom_call.1} parent=1 // pred_check
      _
    $region35: #{tpu_custom_call.1} parent=1 // pred_check_branch
      %283 = sbr.rel (0) target = $region37
    $region36: #{tpu_custom_call.1} parent=1 // pred_region
      %s285 = ssub.s32 256, 256
      %286 = vsyncadd [#allocation4], %s285
      %s287 = sshll.u32 [#allocation8], 4
      %s288 = int_to_ptr.vmem [resolvable:$true] %s287
      %293 = dma.vmem_to_hbm [thread:$0]  %s288, 256, %s5, [#allocation4], 128, 128, 8
    $region37: #{tpu_custom_call.1} parent=1 // pred_fallthru
      _
    // Predicated region
    $region38: #{tpu_custom_call.1} parent=1 // pred_check
      _
    $region39: #{tpu_custom_call.1} parent=1 // pred_check_branch
      %295 = sbr.rel (0) target = $region41
    $region40: #{tpu_custom_call.1} parent=1 // pred_region
      %296 = dma.done [#allocation4], 256
    $region41: #{tpu_custom_call.1} parent=1 // pred_fallthru
      _
    %297 = vsyncpa [#allocation3], 1
    %298 = vsyncpa [#allocation6], 1
    %299 = vsyncpa [#allocation4], 1

// kernel: tpu_custom_call.1
$region0: #{tpu_custom_call.1}
  #allocation0 [shape = 'u32[]', space=smem, size = 0x4, offset = 0x4, fixed_abs, tag = 'smem constant byte address 0x4 - core index']
  #allocation1 [shape = 'u32[144,128]{1,0:T(1,128)}', space=vmem, size = 0x12000, scoped, tag = 'internal scratch']
  %s0 = inlined_call_operand.hbm [shape: bf16[16,32], index: 0, kind: input, shape index: {}]
  %s1 = inlined_call_operand.hbm [shape: bf16[32,128], index: 1, kind: input, shape index: {}]
  %s2 = inlined_call_operand.vmem [shape: f32[1,128], index: 2, kind: input, shape index: {}]
  %s3 = inlined_call_operand.hbm [shape: bf16[128,128], index: 3, kind: input, shape index: {}]
  %s4 = inlined_call_operand.vmem [shape: f32[1,128], index: 4, kind: input, shape index: {}]
  %s5 = inlined_call_operand.hbm [shape: f32[16,128], index: 5, kind: output, shape index: {}]
  %s6 = sld [smem:[#allocation0]]
  $region42: #{tpu_custom_call.1} parent=0
    _
  %s8 = ssub.s32 1, %s6
  %s9 = scalar_select 0, %s8, %s6
  $region1: #{tpu_custom_call.1} parent=0
    #allocation2 [shape = 'u8[4096]{0}', space=vmem, size = 0x1000, scoped, tag = 'input window, operand 0, single buffered']
    #allocation3 [shape = 's32[1]{0}', space=sflag, size = 0x4, scoped, tag = 'scoped memory for tpu_custom_call.1']
    #allocation4 [shape = 's32[1]{0}', space=sflag, size = 0x4, scoped, tag = 'scoped memory for tpu_custom_call.1']
    #allocation5 [shape = 'u8[8192]{0}', space=vmem, size = 0x2000, scoped, tag = 'input window, operand 1, single buffered']
    #allocation6 [shape = 's32[1]{0}', space=sflag, size = 0x4, scoped, tag = 'scoped memory for tpu_custom_call.1']
    #allocation7 [shape = 'u8[32768]{0}', space=vmem, size = 0x8000, scoped, tag = 'input window, operand 3, single buffered']
    #allocation8 [shape = 'u8[8192]{0}', space=vmem, size = 0x2000, scoped, tag = 'output window, operand 0, single buffered']
    %10 = vsyncpa [#allocation3], 0
    %11 = vsyncpa [#allocation6], 0
    %12 = vsyncpa [#allocation4], 0
    // Predicated region
    $region2: #{tpu_custom_call.1} parent=1 // pred_check
      _
    $region3: #{tpu_custom_call.1} parent=1 // pred_check_branch
      %14 = sbr.rel (0) target = $region5
    $region4: #{tpu_custom_call.1} parent=1 // pred_region
      %s16 = ssub.s32 128, 128
      %17 = vsyncadd [#allocation3], %s16
      %s18 = sshll.u32 [#allocation2], 4
      %s19 = int_to_ptr.vmem [resolvable:$true] %s18
      %24 = dma.hbm_to_vmem [thread:$0]  %s0, 128, %s19, [#allocation3], 64, 64, 4
    $region5: #{tpu_custom_call.1} parent=1 // pred_fallthru
      _
    // Predicated region
    $region6: #{tpu_custom_call.1} parent=1 // pred_check
      _
    $region7: #{tpu_custom_call.1} parent=1 // pred_check_branch
      %26 = sbr.rel (0) target = $region9
    $region8: #{tpu_custom_call.1} parent=1 // pred_region
      %s28 = ssub.s32 256, 256
      %29 = vsyncadd [#allocation6], %s28
      %s30 = sshll.u32 [#allocation5], 4
      %s31 = int_to_ptr.vmem [resolvable:$true] %s30
      %36 = dma.hbm_to_vmem [thread:$0]  %s1, 256, %s31, [#allocation6], 64, 64, 4
    $region9: #{tpu_custom_call.1} parent=1 // pred_fallthru
      _
    // Predicated region
    $region10: #{tpu_custom_call.1} parent=1 // pred_check
      _
    $region11: #{tpu_custom_call.1} parent=1 // pred_check_branch
      %38 = sbr.rel (0) target = $region13
    $region12: #{tpu_custom_call.1} parent=1 // pred_region
      _
    $region13: #{tpu_custom_call.1} parent=1 // pred_fallthru
      _
    // Predicated region
    $region14: #{tpu_custom_call.1} parent=1 // pred_check
      _
    $region15: #{tpu_custom_call.1} parent=1 // pred_check_branch
      %40 = sbr.rel (0) target = $region17
    $region16: #{tpu_custom_call.1} parent=1 // pred_region
      %s42 = ssub.s32 1024, 1024
      %43 = vsyncadd [#allocation6], %s42
      %s44 = sshll.u32 [#allocation7], 4
      %s45 = int_to_ptr.vmem [resolvable:$true] %s44
      %50 = dma.hbm_to_vmem [thread:$0]  %s3, 1024, %s45, [#allocation6], 64, 64, 4
    $region17: #{tpu_custom_call.1} parent=1 // pred_fallthru
      _
    // Predicated region
    $region18: #{tpu_custom_call.1} parent=1 // pred_check
      _
    $region19: #{tpu_custom_call.1} parent=1 // pred_check_branch
      %52 = sbr.rel (0) target = $region21
    $region20: #{tpu_custom_call.1} parent=1 // pred_region
      _
    $region21: #{tpu_custom_call.1} parent=1 // pred_fallthru
      _
    // Predicated region
    $region22: #{tpu_custom_call.1} parent=1 // pred_check
      _
    $region23: #{tpu_custom_call.1} parent=1 // pred_check_branch
      %54 = sbr.rel (0) target = $region25
    $region24: #{tpu_custom_call.1} parent=1 // pred_region
      %55 = dma.done [#allocation3], 128
    $region25: #{tpu_custom_call.1} parent=1 // pred_fallthru
      _
    // Predicated region
    $region26: #{tpu_custom_call.1} parent=1 // pred_check
      _
    $region27: #{tpu_custom_call.1} parent=1 // pred_check_branch
      %57 = sbr.rel (0) target = $region29
    $region28: #{tpu_custom_call.1} parent=1 // pred_region
      %58 = dma.done [#allocation6], 256
    $region29: #{tpu_custom_call.1} parent=1 // pred_fallthru
      _
    // Predicated region
    $region30: #{tpu_custom_call.1} parent=1 // pred_check
      _
    $region31: #{tpu_custom_call.1} parent=1 // pred_check_branch
      %60 = sbr.rel (0) target = $region33
    $region32: #{tpu_custom_call.1} parent=1 // pred_region
      %61 = dma.done [#allocation6], 1024
    $region33: #{tpu_custom_call.1} parent=1 // pred_fallthru
      _
    %v63 = vld [vmem:[#allocation2] sm:$0xf]
    %v64 = vld [vmem:[#allocation2 + $0x4] sm:$0xf]
    %v65 = vld [vmem:[#allocation5] sm:$0xf]
    %v66 = vld [vmem:[#allocation5 + $0x4] sm:$0xf]
    %v67 = vld [vmem:[#allocation5 + $0x8] sm:$0xf]
    %v68 = vld [vmem:[#allocation5 + $0xc] sm:$0xf]
    %v69 = vld [vmem:[%s2] sm:$0x1]
    %v71 = vlaneseq
    %v72 = vshrl.u32 %v71, 7
    %v73 = vsub.s32 0, %v72
    %v74 = vrot.slane %v69, %v73
    %v78 = vunpack.c.l.b16 %v63
    %v79 = vunpack.c.l.b16 %v64
    %v80 = vpack.c.b16 %v79, %v78
    %v85 = vunpack.c.l.b16 %v65
    %v86 = vunpack.c.l.b16 %v66
    %v87 = vunpack.c.l.b16 %v67
    %v88 = vunpack.c.l.b16 %v68
    %v89 = vpack.c.b16 %v86, %v85
    %v90 = vpack.c.b16 %v88, %v87
    %vm93 = vcmask 261120
    %v95 = vsel %vm93, %v80, 0
    %97 = vmatprep.subr.bf16.mxu0 0
    %98 = vmatpush1.bf16.msra.mxu0 %v89
    %99 = vmatprep.subr.bf16.mxu0 0
    %100 = vmatpush1.bf16.msra.mxu0 %v90
    %101 = vmatprep.subr.bf16.mxu0 0
    %102 = vmatpush1.bf16.msra.mxu0 0
    %103 = vmatprep.subr.bf16.mxu0 0
    %104 = vmatpush1.bf16.msra.mxu0 0
    %105 = vmatprep.subr.bf16.mxu0 0
    %106 = vmatpush1.bf16.msra.mxu0 0
    %107 = vmatprep.subr.bf16.mxu0 0
    %108 = vmatpush1.bf16.msra.mxu0 0
    %109 = vmatprep.subr.bf16.mxu0 0
    %110 = vmatpush1.bf16.msra.mxu0 0
    %111 = vmatprep.subr.bf16.mxu0 0
    %112 = vmatpush1.bf16.msra.mxu0 0
    %113 = vmatprep.subr.bf16.mxu0 0
    %114 = vmatpush1.bf16.msra.mxu0 0
    %115 = vmatprep.subr.bf16.mxu0 0
    %116 = vmatpush1.bf16.msra.mxu0 0
    %117 = vmatprep.subr.bf16.mxu0 0
    %118 = vmatpush1.bf16.msra.mxu0 0
    %119 = vmatprep.subr.bf16.mxu0 0
    %120 = vmatpush1.bf16.msra.mxu0 0
    %121 = vmatprep.subr.bf16.mxu0 0
    %122 = vmatpush1.bf16.msra.mxu0 0
    %123 = vmatprep.subr.bf16.mxu0 0
    %124 = vmatpush1.bf16.msra.mxu0 0
    %125 = vmatprep.subr.bf16.mxu0 0
    %126 = vmatpush1.bf16.msra.mxu0 0
    %127 = vmatprep.subr.bf16.mxu0 0
    %128 = vmatpush1.bf16.msra.mxu0 0
    %129 = vmatprep.mubr.bf16.mxu0 0
    %130 = vmatmul.mubr.bf16.gmra.mrb[0].mxu0 %v95
    %v131 = vpop.f32.mrb[0].mxu0
    %v132 = vadd.f32 %v74, %v131
    %v133 = vpop.f32.mrb[0].mxu0
    %v134 = vpop.f32.mrb[0].mxu0
    %v135 = vadd.f32 %v74, %v134
    %v136 = vpop.f32.mrb[0].mxu0
    %137 = vdwg.mxu0
    %v138 = vmul.f32 %v132, %v132
    %v139 = vmul.f32 %v135, %v135
    %140 = vadd.xlane.f32.xlu0 %v138
    %v141 = vpop.xlane.xlu0 %140
    %142 = vadd.xlane.f32.xlu0 %v139
    %v143 = vpop.xlane.xlu0 %142
    %v144 = vpack.c.bf16 %v135, %v132
    %v145 = vld [vmem:[#allocation7] sm:$0xf]
    %v146 = vld [vmem:[#allocation7 + $0x4] sm:$0xf]
    %v147 = vld [vmem:[#allocation7 + $0x8] sm:$0xf]
    %v148 = vld [vmem:[#allocation7 + $0xc] sm:$0xf]
    %v149 = vld [vmem:[#allocation7 + $0x10] sm:$0xf]
    %v150 = vld [vmem:[#allocation7 + $0x14] sm:$0xf]
    %v151 = vld [vmem:[#allocation7 + $0x18] sm:$0xf]
    %v152 = vld [vmem:[#allocation7 + $0x1c] sm:$0xf]
    %v153 = vld [vmem:[#allocation7 + $0x20] sm:$0xf]
    %v154 = vld [vmem:[#allocation7 + $0x24] sm:$0xf]
    %v155 = vld [vmem:[#allocation7 + $0x28] sm:$0xf]
    %v156 = vld [vmem:[#allocation7 + $0x2c] sm:$0xf]
    %v157 = vld [vmem:[#allocation7 + $0x30] sm:$0xf]
    %v158 = vld [vmem:[#allocation7 + $0x34] sm:$0xf]
    %v159 = vld [vmem:[#allocation7 + $0x38] sm:$0xf]
    %v160 = vld [vmem:[#allocation7 + $0x3c] sm:$0xf]
    %v177 = vunpack.c.l.b16 %v145
    %v178 = vunpack.c.l.b16 %v146
    %v179 = vunpack.c.l.b16 %v147
    %v180 = vunpack.c.l.b16 %v148
    %v181 = vunpack.c.l.b16 %v149
    %v182 = vunpack.c.l.b16 %v150
    %v183 = vunpack.c.l.b16 %v151
    %v184 = vunpack.c.l.b16 %v152
    %v185 = vunpack.c.l.b16 %v153
    %v186 = vunpack.c.l.b16 %v154
    %v187 = vunpack.c.l.b16 %v155
    %v188 = vunpack.c.l.b16 %v156
    %v189 = vunpack.c.l.b16 %v157
    %v190 = vunpack.c.l.b16 %v158
    %v191 = vunpack.c.l.b16 %v159
    %v192 = vunpack.c.l.b16 %v160
    %v193 = vpack.c.b16 %v178, %v177
    %v194 = vpack.c.b16 %v180, %v179
    %v195 = vpack.c.b16 %v182, %v181
    %v196 = vpack.c.b16 %v184, %v183
    %v197 = vpack.c.b16 %v186, %v185
    %v198 = vpack.c.b16 %v188, %v187
    %v199 = vpack.c.b16 %v190, %v189
    %v200 = vpack.c.b16 %v192, %v191
    %209 = vmatprep.subr.bf16.mxu0 0
    %210 = vmatpush1.bf16.msra.mxu0 %v193
    %211 = vmatprep.subr.bf16.mxu0 0
    %212 = vmatpush1.bf16.msra.mxu0 %v194
    %213 = vmatprep.subr.bf16.mxu0 0
    %214 = vmatpush1.bf16.msra.mxu0 %v195
    %215 = vmatprep.subr.bf16.mxu0 0
    %216 = vmatpush1.bf16.msra.mxu0 %v196
    %217 = vmatprep.subr.bf16.mxu0 0
    %218 = vmatpush1.bf16.msra.mxu0 %v197
    %219 = vmatprep.subr.bf16.mxu0 0
    %220 = vmatpush1.bf16.msra.mxu0 %v198
    %221 = vmatprep.subr.bf16.mxu0 0
    %222 = vmatpush1.bf16.msra.mxu0 %v199
    %223 = vmatprep.subr.bf16.mxu0 0
    %224 = vmatpush1.bf16.msra.mxu0 %v200
    %225 = vmatprep.subr.bf16.mxu0 0
    %226 = vmatpush1.bf16.msra.mxu0 0
    %227 = vmatprep.subr.bf16.mxu0 0
    %228 = vmatpush1.bf16.msra.mxu0 0
    %229 = vmatprep.subr.bf16.mxu0 0
    %230 = vmatpush1.bf16.msra.mxu0 0
    %231 = vmatprep.subr.bf16.mxu0 0
    %232 = vmatpush1.bf16.msra.mxu0 0
    %233 = vmatprep.subr.bf16.mxu0 0
    %234 = vmatpush1.bf16.msra.mxu0 0
    %235 = vmatprep.subr.bf16.mxu0 0
    %236 = vmatpush1.bf16.msra.mxu0 0
    %237 = vmatprep.subr.bf16.mxu0 0
    %238 = vmatpush1.bf16.msra.mxu0 0
    %239 = vmatprep.subr.bf16.mxu0 0
    %240 = vmatpush1.bf16.msra.mxu0 0
    %241 = vmatprep.mubr.bf16.mxu0 0
    %242 = vmatmul.mubr.bf16.gmra.mrb[0].mxu0 %v144
    %v243 = vpop.f32.mrb[0].mxu0
    %v244 = vadd.f32 0.0, %v243
    %v245 = vpop.f32.mrb[0].mxu0
    %v246 = vpop.f32.mrb[0].mxu0
    %v247 = vadd.f32 0.0, %v246
    %v248 = vpop.f32.mrb[0].mxu0
    %249 = vdwg.mxu0
    %v250 = vld [vmem:[%s4] sm:$0x1]
    %v252 = vlaneseq
    %v253 = vshrl.u32 %v252, 7
    %v254 = vsub.s32 0, %v253
    %v255 = vrot.slane %v250, %v254
    %v257 = vadd.f32 %v141, %v255
    %v258 = vadd.f32 %v143, %v255
    %v259 = vadd.f32 %v257, %v244
    %v260 = vadd.f32 %v258, %v247
    %v261 = vmax.f32 %v259, 0.0
    %v262 = vmax.f32 %v260, 0.0
    %v263 = vadd.f32 %v261, 1.0
    %v264 = vadd.f32 %v262, 1.0
    %v265 = vrcp.pop %v263
    %v266 = vrcp.pop %v264
    %v267 = vlaneseq
    %v268 = vand.u32 %v267, 127
    %vm269 = vcmp.lt.s32.totalorder %v268, 4
    %v270 = vsel %vm269, %v265, 0.0
    %v271 = vsel %vm269, %v266, 0.0
    %272 = vadd.xlane.f32.xlu0 %v270
    %v273 = vpop.xlane.xlu0 %272
    %274 = vadd.xlane.f32.xlu0 %v271
    %v275 = vpop.xlane.xlu0 %274
    %v276 = vrcp.pop %v273
    %v277 = vmul.f32 %v270, %v276
    %v278 = vrcp.pop %v275
    %v279 = vmul.f32 %v271, %v278
    %280 = vst [vmem:[#allocation8] sm:$0xff] %v277
    %281 = vst [vmem:[#allocation8 + $0x8] sm:$0xff] %v279
    // Predicated region
    $region34: #{tpu_custom_call.1} parent=1 // pred_check
      _
    $region35: #{tpu_custom_call.1} parent=1 // pred_check_branch
      %283 = sbr.rel (0) target = $region37
    $region36: #{tpu_custom_call.1} parent=1 // pred_region
      %s285 = ssub.s32 256, 256
      %286 = vsyncadd [#allocation4], %s285
      %s287 = sshll.u32 [#allocation8], 4
      %s288 = int_to_ptr.vmem [resolvable:$true] %s287
      %293 = dma.vmem_to_hbm [thread:$0]  %s288, 256, %s5, [#allocation4], 128, 128, 8
    $region37: #{tpu_custom_call.1} parent=1 // pred_fallthru
      _
    // Predicated region
    $region38: #{tpu_custom_call.1} parent=1 // pred_check
      _
    $region39: #{tpu_custom_call.1} parent=1 // pred_check_branch
      %295 = sbr.rel (0) target = $region41
    $region40: #{tpu_custom_call.1} parent=1 // pred_region
      %296 = dma.done [#allocation4], 256
    $region41: #{tpu_custom_call.1} parent=1 // pred_fallthru
      _
    %297 = vsyncpa [#allocation3], 1
    %298 = vsyncpa [#allocation6], 1
    %299 = vsyncpa [#allocation4], 1

</llo_original>
